<compile_context>
chip_gen: v7x
topology: tpu7x:2x2x1
jax: 0.10.0
libtpu: 0.0.40
codegen_flags: <defaults>
</compile_context>

<pallas_src>
import jax
import jax.numpy as jnp
from jax.experimental import pallas as pl
from jax.experimental.pallas import tpu as pltpu

_LANE = 1024          # lane-dense last dim (multiple of 128)
_MAX_TILE_ROWS = 512  # (512, 1024) f32 = 2 MiB per array per block

# Defensive: name changed across JAX versions.
_CompilerParams = getattr(pltpu, "CompilerParams", None) or getattr(
    pltpu, "TPUCompilerParams")


def _round_up(a: int, b: int) -> int:
    return ((a + b - 1) // b) * b


def _make_kernel(mean: float, std: float):
    def kernel(x_ref, n_ref, o_ref):
        # Fused: o = x + (mean + std * n); single cast at the store.
        noise = n_ref[...] * std
        if mean != 0.0:               # drop the dead add when mean == 0
            noise = noise + mean
        o_ref[...] = x_ref[...] + noise.astype(o_ref.dtype)
    return kernel


def gaussian_noise(x: jax.Array, key: jax.Array,
                   mean: float = 0.0, std: float = 0.2) -> jax.Array:
    orig_shape, orig_dtype = x.shape, x.dtype
    n = x.size

    # Lane-dense 2-D slab, padded so the row count divides evenly into tiles
    # (last two block dims stay multiples of (8, 128)).
    rows_min = pl.cdiv(n, _LANE)
    tile_rows = min(_MAX_TILE_ROWS, _round_up(rows_min, 8))
    rows = _round_up(rows_min, tile_rows)
    padded = rows * _LANE

    x_flat = jnp.ravel(x)
    if padded != n:
        x_flat = jnp.pad(x_flat, (0, padded - n))
    x2d = x_flat.reshape(rows, _LANE)

    # Standard-normal noise; each grid tile reads its own distinct slice, so
    # there is no per-tile reseeding / correlated-noise hazard.
    noise2d = jax.random.normal(key, (rows, _LANE), dtype=jnp.float32)

    grid = (rows // tile_rows,)
    spec = pl.BlockSpec((tile_rows, _LANE), lambda i: (i, 0))

    itemsize = jnp.dtype(orig_dtype).itemsize
    cost = pl.CostEstimate(
        flops=2 * padded,
        transcendentals=0,
        bytes_accessed=padded * (2 * itemsize + 4),
    )

    out2d = pl.pallas_call(
        _make_kernel(float(mean), float(std)),
        out_shape=jax.ShapeDtypeStruct((rows, _LANE), orig_dtype),
        grid=grid,
        in_specs=[spec, spec],
        out_specs=spec,
        compiler_params=_CompilerParams(
            dimension_semantics=("parallel",)),
        cost_estimate=cost,
    )(x2d, noise2d)

    return out2d.reshape(-1)[:n].reshape(orig_shape)


if __name__ == "__main__":
    key = jax.random.PRNGKey(0)
    kx, kn = jax.random.split(key)

    # Small NCHW input consistent with an image-transform module.
    x = jax.random.normal(kx, (2, 4, 16, 16), dtype=jnp.float32)

    y = gaussian_noise(x, kn, mean=0.0, std=0.2)
    y = jax.block_until_ready(y)

    # Sanity checks: shape/dtype preserved, added noise has ~N(0, 0.2) stats.
    assert y.shape == x.shape and y.dtype == x.dtype
    noise = y - x
    assert abs(float(jnp.mean(noise))) < 0.05, float(jnp.mean(noise))
    assert abs(float(jnp.std(noise)) - 0.2) < 0.05, float(jnp.std(noise))

    print("KERNEL_OK")
</pallas_src>

<mosaic_0001>
module attributes {stable_mosaic.version = 11 : i64} {
  func.func @kernel(%arg0: i32, %arg1: memref<8x1024xf32, #tpu.memory_space<vmem>>, %arg2: memref<8x1024xf32, #tpu.memory_space<vmem>>, %arg3: memref<8x1024xf32, #tpu.memory_space<vmem>>) attributes {dimension_semantics = [#tpu.dimension_semantics<parallel>], iteration_bounds = array<i64: 1>, scalar_prefetch = 0 : i64, scratch_operands = 0 : i64, tpu.core_type = #tpu.core_type<tc>, window_params = [{transform_indices = @transform_0, window_bounds = array<i64: 8, 1024>}, {transform_indices = @transform_1, window_bounds = array<i64: 8, 1024>}, {transform_indices = @transform_2, window_bounds = array<i64: 8, 1024>}]} {
    %c0 = arith.constant 0 : index
    %c0_0 = arith.constant 0 : index
    %0 = vector.load %arg2[%c0, %c0_0] : memref<8x1024xf32, #tpu.memory_space<vmem>>, vector<8x1024xf32>
    %cst = arith.constant 2.000000e-01 : f32
    %1 = vector.broadcast %cst : f32 to vector<8x1024xf32>
    %2 = arith.mulf %0, %1 : vector<8x1024xf32>
    %c0_1 = arith.constant 0 : index
    %c0_2 = arith.constant 0 : index
    %3 = vector.load %arg1[%c0_1, %c0_2] : memref<8x1024xf32, #tpu.memory_space<vmem>>, vector<8x1024xf32>
    %4 = arith.addf %3, %2 : vector<8x1024xf32>
    %c0_3 = arith.constant 0 : index
    %c0_4 = arith.constant 0 : index
    %5 = vector.load %arg3[%c0_3, %c0_4] : memref<8x1024xf32, #tpu.memory_space<vmem>>, vector<8x1024xf32>
    tpu.vector_store %arg3[%c0_3, %c0_4], %4 {strides = array<i32>} : memref<8x1024xf32, #tpu.memory_space<vmem>>, vector<8x1024xf32>,
    return
  }
  func.func @transform_0(%arg0: i32) -> (i32, i32) {
    %c0_i32 = arith.constant 0 : i32
    %c0_i32_0 = arith.constant 0 : i32
    return %arg0, %c0_i32 : i32, i32
  }
  func.func @transform_1(%arg0: i32) -> (i32, i32) {
    %c0_i32 = arith.constant 0 : i32
    %c0_i32_0 = arith.constant 0 : i32
    return %arg0, %c0_i32 : i32, i32
  }
  func.func @transform_2(%arg0: i32) -> (i32, i32) {
    %c0_i32 = arith.constant 0 : i32
    %c0_i32_0 = arith.constant 0 : i32
    return %arg0, %c0_i32 : i32, i32
  }
}

</mosaic_0001>

<llo_original>
// kernel: tpu_custom_call.1
$region0: #{tpu_custom_call.1}
  #allocation0 [shape = 'u32[]', space=smem, size = 0x4, offset = 0x4, fixed_abs, tag = 'smem constant byte address 0x4 - core index']
  #allocation1 [shape = 'u32[144,128]{1,0:T(1,128)}', space=vmem, size = 0x12000, scoped, tag = 'internal scratch']
  %s0 = inlined_call_operand.hbm [shape: f32[8,1024], index: 0, kind: input, shape index: {}]
  %s1 = inlined_call_operand.hbm [shape: f32[8,1024], index: 1, kind: input, shape index: {}]
  %s2 = inlined_call_operand.hbm [shape: f32[8,1024], index: 2, kind: output, shape index: {}]
  %s3 = sld [smem:[#allocation0]]
  $region26: #{tpu_custom_call.1} parent=0
    _
  %s5 = ssub.s32 1, %s3
  %s6 = scalar_select 0, %s5, %s3
  $region1: #{tpu_custom_call.1} parent=0
    #allocation2 [shape = 'u8[32768]{0}', space=vmem, size = 0x8000, scoped, tag = 'input window, operand 0, single buffered']
    #allocation3 [shape = 's32[1]{0}', space=sflag, size = 0x4, scoped, tag = 'scoped memory for tpu_custom_call.1']
    #allocation4 [shape = 's32[1]{0}', space=sflag, size = 0x4, scoped, tag = 'scoped memory for tpu_custom_call.1']
    #allocation5 [shape = 'u8[32768]{0}', space=vmem, size = 0x8000, scoped, tag = 'input window, operand 1, single buffered']
    #allocation6 [shape = 's32[1]{0}', space=sflag, size = 0x4, scoped, tag = 'scoped memory for tpu_custom_call.1']
    #allocation7 [shape = 'u8[32768]{0}', space=vmem, size = 0x8000, scoped, tag = 'output window, operand 0, single buffered']
    %7 = vsyncpa [#allocation3], 0
    %8 = vsyncpa [#allocation6], 0
    %9 = vsyncpa [#allocation4], 0
    // Predicated region
    $region2: #{tpu_custom_call.1} parent=1 // pred_check
      _
    $region3: #{tpu_custom_call.1} parent=1 // pred_check_branch
      %11 = sbr.rel (0) target = $region5
    $region4: #{tpu_custom_call.1} parent=1 // pred_region
      %s13 = ssub.s32 1024, 1024
      %14 = vsyncadd [#allocation3], %s13
      %s16 = sshll.u32 [#allocation2], 4
      %s17 = int_to_ptr.vmem [resolvable:$true] %s16
      %19 = dma.hbm_to_vmem [thread:$0]  %s0, 1024, %s17, [#allocation3]
    $region5: #{tpu_custom_call.1} parent=1 // pred_fallthru
      _
    // Predicated region
    $region6: #{tpu_custom_call.1} parent=1 // pred_check
      _
    $region7: #{tpu_custom_call.1} parent=1 // pred_check_branch
      %21 = sbr.rel (0) target = $region9
    $region8: #{tpu_custom_call.1} parent=1 // pred_region
      %s23 = ssub.s32 1024, 1024
      %24 = vsyncadd [#allocation6], %s23
      %s26 = sshll.u32 [#allocation5], 4
      %s27 = int_to_ptr.vmem [resolvable:$true] %s26
      %29 = dma.hbm_to_vmem [thread:$0]  %s1, 1024, %s27, [#allocation6]
    $region9: #{tpu_custom_call.1} parent=1 // pred_fallthru
      _
    // Predicated region
    $region10: #{tpu_custom_call.1} parent=1 // pred_check
      _
    $region11: #{tpu_custom_call.1} parent=1 // pred_check_branch
      %31 = sbr.rel (0) target = $region13
    $region12: #{tpu_custom_call.1} parent=1 // pred_region
      %32 = dma.done [#allocation3], 1024
    $region13: #{tpu_custom_call.1} parent=1 // pred_fallthru
      _
    // Predicated region
    $region14: #{tpu_custom_call.1} parent=1 // pred_check
      _
    $region15: #{tpu_custom_call.1} parent=1 // pred_check_branch
      %34 = sbr.rel (0) target = $region17
    $region16: #{tpu_custom_call.1} parent=1 // pred_region
      %35 = dma.done [#allocation6], 1024
    $region17: #{tpu_custom_call.1} parent=1 // pred_fallthru
      _
    %v36 = vld [vmem:[#allocation5] sm:$0xff]
    %v37 = vld [vmem:[#allocation5 + $0x8] sm:$0xff]
    %v38 = vld [vmem:[#allocation5 + $0x10] sm:$0xff]
    %v39 = vld [vmem:[#allocation5 + $0x18] sm:$0xff]
    %v40 = vld [vmem:[#allocation5 + $0x20] sm:$0xff]
    %v41 = vld [vmem:[#allocation5 + $0x28] sm:$0xff]
    %v42 = vld [vmem:[#allocation5 + $0x30] sm:$0xff]
    %v43 = vld [vmem:[#allocation5 + $0x38] sm:$0xff]
    %v44 = vmul.f32 %v36, 0.2
    %v45 = vmul.f32 %v37, 0.2
    %v46 = vmul.f32 %v38, 0.2
    %v47 = vmul.f32 %v39, 0.2
    %v48 = vmul.f32 %v40, 0.2
    %v49 = vmul.f32 %v41, 0.2
    %v50 = vmul.f32 %v42, 0.2
    %v51 = vmul.f32 %v43, 0.2
    %v52 = vld [vmem:[#allocation2] sm:$0xff]
    %v53 = vld [vmem:[#allocation2 + $0x8] sm:$0xff]
    %v54 = vld [vmem:[#allocation2 + $0x10] sm:$0xff]
    %v55 = vld [vmem:[#allocation2 + $0x18] sm:$0xff]
    %v56 = vld [vmem:[#allocation2 + $0x20] sm:$0xff]
    %v57 = vld [vmem:[#allocation2 + $0x28] sm:$0xff]
    %v58 = vld [vmem:[#allocation2 + $0x30] sm:$0xff]
    %v59 = vld [vmem:[#allocation2 + $0x38] sm:$0xff]
    %v60 = vadd.f32 %v52, %v44
    %v61 = vadd.f32 %v53, %v45
    %v62 = vadd.f32 %v54, %v46
    %v63 = vadd.f32 %v55, %v47
    %v64 = vadd.f32 %v56, %v48
    %v65 = vadd.f32 %v57, %v49
    %v66 = vadd.f32 %v58, %v50
    %v67 = vadd.f32 %v59, %v51
    %68 = vst [vmem:[#allocation7] sm:$0xff] %v60
    %69 = vst [vmem:[#allocation7 + $0x8] sm:$0xff] %v61
    %70 = vst [vmem:[#allocation7 + $0x10] sm:$0xff] %v62
    %71 = vst [vmem:[#allocation7 + $0x18] sm:$0xff] %v63
    %72 = vst [vmem:[#allocation7 + $0x20] sm:$0xff] %v64
    %73 = vst [vmem:[#allocation7 + $0x28] sm:$0xff] %v65
    %74 = vst [vmem:[#allocation7 + $0x30] sm:$0xff] %v66
    %75 = vst [vmem:[#allocation7 + $0x38] sm:$0xff] %v67
    // Predicated region
    $region18: #{tpu_custom_call.1} parent=1 // pred_check
      _
    $region19: #{tpu_custom_call.1} parent=1 // pred_check_branch
      %77 = sbr.rel (0) target = $region21
    $region20: #{tpu_custom_call.1} parent=1 // pred_region
      %s79 = ssub.s32 1024, 1024
      %80 = vsyncadd [#allocation4], %s79
      %s82 = sshll.u32 [#allocation7], 4
      %s83 = int_to_ptr.vmem [resolvable:$true] %s82
      %85 = dma.vmem_to_hbm [thread:$0]  %s83, 1024, %s2, [#allocation4]
    $region21: #{tpu_custom_call.1} parent=1 // pred_fallthru
      _
    // Predicated region
    $region22: #{tpu_custom_call.1} parent=1 // pred_check
      _
    $region23: #{tpu_custom_call.1} parent=1 // pred_check_branch
      %87 = sbr.rel (0) target = $region25
    $region24: #{tpu_custom_call.1} parent=1 // pred_region
      %88 = dma.done [#allocation4], 1024
    $region25: #{tpu_custom_call.1} parent=1 // pred_fallthru
      _
    %89 = vsyncpa [#allocation3], 1
    %90 = vsyncpa [#allocation6], 1
    %91 = vsyncpa [#allocation4], 1

</llo_original>
